<compile_context>
chip_gen: v7x
topology: tpu7x:2x2x1
jax: 0.10.0
libtpu: 0.0.40
codegen_flags: <defaults>
</compile_context>

<pallas_src>
import jax
import jax.numpy as jnp
from jax.experimental import pallas as pl
from jax.experimental.pallas import tpu as pltpu

C, H, W = 3, 32, 32          # input_shape from the module
HW = H * W
CHW = C * HW                 # 3072 = 24 * 128  (lane-aligned)
LANE = 128
N_GROUPS = CHW // LANE       # 24 lane groups per row
TB_MAX = 512                 # max batch rows per block (~6 MiB f32 block)


def _cdiv(a, b):
    return (a + b - 1) // b


def _round_up(v, m):
    return (v + m - 1) // m * m


def _select_tb(B):
    """Pick rows-per-block: minimal padding, >=2 blocks when B > 8, <= TB_MAX."""
    nb = _cdiv(B, TB_MAX)
    if B > 8:
        nb = max(nb, 2)          # >= 2 grid steps so v7x can shard across both TCs
    tb = min(TB_MAX, _round_up(_cdiv(B, nb), 8))
    return tb


def reprogram_kernel(x_ref, consts_ref, o_ref, cnt_ref):
    # x_ref     : (TB, CHW)  image rows (sublane-dense batch, lane-dense CHW)
    # consts_ref: (3, CHW)   row 0 = tanh(W), row 1 = 0.5/std, row 2 = (0.5-mean)/std
    # o_ref     : (TB, CHW)  reprogrammed, normalized net input
    # cnt_ref   : (TB, 128)  per-row partial zero-counts (24 lane groups summed)
    x = x_ref[...]
    tp = consts_ref[0:1, :]          # tanh(W)   (batch-shared)
    a = consts_ref[1:2, :]           # 0.5 / std
    b = consts_ref[2:3, :]           # (0.5 - mean) / std

    u = 2.0 * x - 1.0                # X_adv = 2*X - 1
    # tanh(atanh(u) + W) == (u + tanh(W)) / (1 + u*tanh(W)): removes both logs
    # and the per-element tanh.  |tanh(W)| < 1 so the denominator never hits 0.
    t = (u + tp) / (1.0 + u * tp)
    out = a * t + b                  # 0.5*t + 0.5, then (x - mean)/std, folded
    o_ref[...] = out

    # Forward-hook statistic: per-sample count of exact zeros.  Reduce the 24
    # lane groups with whole-vreg slices (no relayout); the 128-lane finish is
    # done in the wrapper.  Lane-dense (TB, 128) store -> unmasked vst.
    z = (out == 0.0).astype(jnp.float32)
    acc = z[:, 0:LANE]
    for g in range(1, N_GROUPS):
        acc = acc + z[:, g * LANE:(g + 1) * LANE]
    cnt_ref[...] = acc


@jax.jit
def program_forward(image, W_param, mean, std):
    """image: (B, C, H, W) f32 in [0,1].  Returns (X_adv, (layer_activations, density))."""
    B = image.shape[0]
    x = image.reshape(B, CHW).astype(jnp.float32)

    # Batch-shared constants, precomputed once and packed into a single slab.
    inv_std = 1.0 / std.astype(jnp.float32)                                # (C,)
    tp = jnp.tanh(W_param.reshape(1, CHW).astype(jnp.float32))             # (1, CHW)
    a_row = jnp.repeat(0.5 * inv_std, HW).reshape(1, CHW)
    b_row = jnp.repeat((0.5 - mean.astype(jnp.float32)) * inv_std, HW).reshape(1, CHW)
    consts = jnp.concatenate([tp, a_row, b_row], axis=0)                   # (3, CHW)

    TB = _select_tb(B)
    n_blocks = _cdiv(B, TB)

    out, counts = pl.pallas_call(
        reprogram_kernel,
        out_shape=(
            jax.ShapeDtypeStruct((B, CHW), jnp.float32),
            jax.ShapeDtypeStruct((B, LANE), jnp.float32),
        ),
        grid_spec=pltpu.PrefetchScalarGridSpec(
            num_scalar_prefetch=0,
            grid=(n_blocks,),
            in_specs=[
                pl.BlockSpec((TB, CHW), lambda i: (i, 0)),   # image rows
                pl.BlockSpec((3, CHW), lambda i: (0, 0)),    # packed shared rows
            ],
            out_specs=[
                pl.BlockSpec((TB, CHW), lambda i: (i, 0)),   # X_adv
                pl.BlockSpec((TB, LANE), lambda i: (i, 0)),  # partial zero-counts
            ],
        ),
        compiler_params=pltpu.CompilerParams(
            dimension_semantics=("parallel",),
            vmem_limit_bytes=32 * 1024 * 1024,
        ),
    )(x, consts)

    X_adv = out.reshape(B, C, H, W)

    # Finish the per-sample zero-count (128-lane sum of the partials) and
    # convert to the hook's density statistic (per-sample, first conv input).
    zero_values = jnp.sum(counts, axis=1)
    density = 1.0 - zero_values / float(CHW)

    layer_activations = {}
    return X_adv, (layer_activations, density)


if __name__ == "__main__":
    key = jax.random.PRNGKey(0)
    k_img, k_w = jax.random.split(key)

    B = 2
    image = jax.random.uniform(k_img, (B, C, H, W), dtype=jnp.float32)  # pixels in [0,1]
    # Program.__init__ initializes W to zeros (loaded from program_path in the
    # original); use a small deterministic random program here to exercise it.
    W_param = 0.1 * jax.random.normal(k_w, (C, H, W), dtype=jnp.float32)

    mean = jnp.array([0.4914, 0.4822, 0.4465], dtype=jnp.float32)
    std = jnp.array([0.2023, 0.1994, 0.201], dtype=jnp.float32)

    X_adv, (layer_activations, density) = program_forward(image, W_param, mean, std)
    jax.block_until_ready(X_adv)
    jax.block_until_ready(density)

    # Sanity check against the original log/tanh formulation in plain JAX.
    x_ref = 2.0 * image - 1.0
    x_ref = jnp.tanh(0.5 * (jnp.log(1.0 + x_ref + 1e-15) - jnp.log(1.0 - x_ref + 1e-15))
                     + W_param[None])
    x_ref = 0.5 * x_ref + 0.5
    x_ref = (x_ref - mean[None, :, None, None]) / std[None, :, None, None]
    assert jnp.allclose(X_adv, x_ref, atol=1e-4, rtol=1e-4)

    # Check the fused zero-count/density against a plain-jnp recomputation.
    zc_ref = jnp.sum(X_adv == 0.0, axis=(1, 2, 3)).astype(jnp.float32)
    dens_ref = 1.0 - zc_ref / float(CHW)
    assert density.shape == (B,)
    assert jnp.allclose(density, dens_ref)

    print("KERNEL_OK")
</pallas_src>

<mosaic_0001>
module attributes {stable_mosaic.version = 11 : i64} {
  func.func @reprogram_kernel(%arg0: i32, %arg1: memref<8x3072xf32, #tpu.memory_space<vmem>>, %arg2: memref<3x3072xf32, #tpu.memory_space<vmem>>, %arg3: memref<8x3072xf32, #tpu.memory_space<vmem>>, %arg4: memref<8x128xf32, #tpu.memory_space<vmem>>) attributes {dimension_semantics = [#tpu.dimension_semantics<parallel>], iteration_bounds = array<i64: 1>, scalar_prefetch = 0 : i64, scratch_operands = 0 : i64, tpu.core_type = #tpu.core_type<tc>, window_params = [{transform_indices = @transform_0, window_bounds = array<i64: 8, 3072>}, {pipeline_mode = #tpu.pipeline_mode<synchronous>, transform_indices = @transform_1, window_bounds = array<i64: 3, 3072>}, {transform_indices = @transform_2, window_bounds = array<i64: 8, 3072>}, {transform_indices = @transform_3, window_bounds = array<i64: 8, 128>}]} {
    %c0 = arith.constant 0 : index
    %c0_0 = arith.constant 0 : index
    %0 = vector.load %arg1[%c0, %c0_0] : memref<8x3072xf32, #tpu.memory_space<vmem>>, vector<8x3072xf32>
    %c0_1 = arith.constant 0 : index
    %c0_2 = arith.constant 0 : index
    %1 = vector.load %arg2[%c0_1, %c0_2] : memref<3x3072xf32, #tpu.memory_space<vmem>>, vector<1x3072xf32>
    %c1 = arith.constant 1 : index
    %c0_3 = arith.constant 0 : index
    %2 = vector.load %arg2[%c1, %c0_3] : memref<3x3072xf32, #tpu.memory_space<vmem>>, vector<1x3072xf32>
    %c2 = arith.constant 2 : index
    %c0_4 = arith.constant 0 : index
    %3 = vector.load %arg2[%c2, %c0_4] : memref<3x3072xf32, #tpu.memory_space<vmem>>, vector<1x3072xf32>
    %cst = arith.constant 2.000000e+00 : f32
    %4 = vector.broadcast %cst : f32 to vector<8x3072xf32>
    %5 = arith.mulf %4, %0 : vector<8x3072xf32>
    %cst_5 = arith.constant 1.000000e+00 : f32
    %6 = vector.broadcast %cst_5 : f32 to vector<8x3072xf32>
    %7 = arith.subf %5, %6 : vector<8x3072xf32>
    %8 = vector.broadcast %1 : vector<1x3072xf32> to vector<8x3072xf32>
    %9 = arith.addf %7, %8 : vector<8x3072xf32>
    %10 = vector.broadcast %1 : vector<1x3072xf32> to vector<8x3072xf32>
    %11 = arith.mulf %7, %10 : vector<8x3072xf32>
    %cst_6 = arith.constant 1.000000e+00 : f32
    %12 = vector.broadcast %cst_6 : f32 to vector<8x3072xf32>
    %13 = arith.addf %12, %11 : vector<8x3072xf32>
    %14 = arith.divf %9, %13 : vector<8x3072xf32>
    %15 = vector.broadcast %2 : vector<1x3072xf32> to vector<8x3072xf32>
    %16 = arith.mulf %15, %14 : vector<8x3072xf32>
    %17 = vector.broadcast %3 : vector<1x3072xf32> to vector<8x3072xf32>
    %18 = arith.addf %16, %17 : vector<8x3072xf32>
    %c0_7 = arith.constant 0 : index
    %c0_8 = arith.constant 0 : index
    %19 = vector.load %arg3[%c0_7, %c0_8] : memref<8x3072xf32, #tpu.memory_space<vmem>>, vector<8x3072xf32>
    tpu.vector_store %arg3[%c0_7, %c0_8], %18 {strides = array<i32>} : memref<8x3072xf32, #tpu.memory_space<vmem>>, vector<8x3072xf32>,
    %cst_9 = arith.constant 0.000000e+00 : f32
    %20 = vector.broadcast %cst_9 : f32 to vector<8x3072xf32>
    %21 = arith.cmpf oeq, %18, %20 : vector<8x3072xf32>
    %22 = arith.extui %21 : vector<8x3072xi1> to vector<8x3072xi32>
    %23 = arith.sitofp %22 : vector<8x3072xi32> to vector<8x3072xf32>
    %24 = vector.extract_strided_slice %23 {offsets = [0, 0], sizes = [8, 128], strides = [1, 1]} : vector<8x3072xf32> to vector<8x128xf32>
    %25 = vector.extract_strided_slice %23 {offsets = [0, 128], sizes = [8, 128], strides = [1, 1]} : vector<8x3072xf32> to vector<8x128xf32>
    %26 = arith.addf %24, %25 : vector<8x128xf32>
    %27 = vector.extract_strided_slice %23 {offsets = [0, 256], sizes = [8, 128], strides = [1, 1]} : vector<8x3072xf32> to vector<8x128xf32>
    %28 = arith.addf %26, %27 : vector<8x128xf32>
    %29 = vector.extract_strided_slice %23 {offsets = [0, 384], sizes = [8, 128], strides = [1, 1]} : vector<8x3072xf32> to vector<8x128xf32>
    %30 = arith.addf %28, %29 : vector<8x128xf32>
    %31 = vector.extract_strided_slice %23 {offsets = [0, 512], sizes = [8, 128], strides = [1, 1]} : vector<8x3072xf32> to vector<8x128xf32>
    %32 = arith.addf %30, %31 : vector<8x128xf32>
    %33 = vector.extract_strided_slice %23 {offsets = [0, 640], sizes = [8, 128], strides = [1, 1]} : vector<8x3072xf32> to vector<8x128xf32>
    %34 = arith.addf %32, %33 : vector<8x128xf32>
    %35 = vector.extract_strided_slice %23 {offsets = [0, 768], sizes = [8, 128], strides = [1, 1]} : vector<8x3072xf32> to vector<8x128xf32>
    %36 = arith.addf %34, %35 : vector<8x128xf32>
    %37 = vector.extract_strided_slice %23 {offsets = [0, 896], sizes = [8, 128], strides = [1, 1]} : vector<8x3072xf32> to vector<8x128xf32>
    %38 = arith.addf %36, %37 : vector<8x128xf32>
    %39 = vector.extract_strided_slice %23 {offsets = [0, 1024], sizes = [8, 128], strides = [1, 1]} : vector<8x3072xf32> to vector<8x128xf32>
    %40 = arith.addf %38, %39 : vector<8x128xf32>
    %41 = vector.extract_strided_slice %23 {offsets = [0, 1152], sizes = [8, 128], strides = [1, 1]} : vector<8x3072xf32> to vector<8x128xf32>
    %42 = arith.addf %40, %41 : vector<8x128xf32>
    %43 = vector.extract_strided_slice %23 {offsets = [0, 1280], sizes = [8, 128], strides = [1, 1]} : vector<8x3072xf32> to vector<8x128xf32>
    %44 = arith.addf %42, %43 : vector<8x128xf32>
    %45 = vector.extract_strided_slice %23 {offsets = [0, 1408], sizes = [8, 128], strides = [1, 1]} : vector<8x3072xf32> to vector<8x128xf32>
    %46 = arith.addf %44, %45 : vector<8x128xf32>
    %47 = vector.extract_strided_slice %23 {offsets = [0, 1536], sizes = [8, 128], strides = [1, 1]} : vector<8x3072xf32> to vector<8x128xf32>
    %48 = arith.addf %46, %47 : vector<8x128xf32>
    %49 = vector.extract_strided_slice %23 {offsets = [0, 1664], sizes = [8, 128], strides = [1, 1]} : vector<8x3072xf32> to vector<8x128xf32>
    %50 = arith.addf %48, %49 : vector<8x128xf32>
    %51 = vector.extract_strided_slice %23 {offsets = [0, 1792], sizes = [8, 128], strides = [1, 1]} : vector<8x3072xf32> to vector<8x128xf32>
    %52 = arith.addf %50, %51 : vector<8x128xf32>
    %53 = vector.extract_strided_slice %23 {offsets = [0, 1920], sizes = [8, 128], strides = [1, 1]} : vector<8x3072xf32> to vector<8x128xf32>
    %54 = arith.addf %52, %53 : vector<8x128xf32>
    %55 = vector.extract_strided_slice %23 {offsets = [0, 2048], sizes = [8, 128], strides = [1, 1]} : vector<8x3072xf32> to vector<8x128xf32>
    %56 = arith.addf %54, %55 : vector<8x128xf32>
    %57 = vector.extract_strided_slice %23 {offsets = [0, 2176], sizes = [8, 128], strides = [1, 1]} : vector<8x3072xf32> to vector<8x128xf32>
    %58 = arith.addf %56, %57 : vector<8x128xf32>
    %59 = vector.extract_strided_slice %23 {offsets = [0, 2304], sizes = [8, 128], strides = [1, 1]} : vector<8x3072xf32> to vector<8x128xf32>
    %60 = arith.addf %58, %59 : vector<8x128xf32>
    %61 = vector.extract_strided_slice %23 {offsets = [0, 2432], sizes = [8, 128], strides = [1, 1]} : vector<8x3072xf32> to vector<8x128xf32>
    %62 = arith.addf %60, %61 : vector<8x128xf32>
    %63 = vector.extract_strided_slice %23 {offsets = [0, 2560], sizes = [8, 128], strides = [1, 1]} : vector<8x3072xf32> to vector<8x128xf32>
    %64 = arith.addf %62, %63 : vector<8x128xf32>
    %65 = vector.extract_strided_slice %23 {offsets = [0, 2688], sizes = [8, 128], strides = [1, 1]} : vector<8x3072xf32> to vector<8x128xf32>
    %66 = arith.addf %64, %65 : vector<8x128xf32>
    %67 = vector.extract_strided_slice %23 {offsets = [0, 2816], sizes = [8, 128], strides = [1, 1]} : vector<8x3072xf32> to vector<8x128xf32>
    %68 = arith.addf %66, %67 : vector<8x128xf32>
    %69 = vector.extract_strided_slice %23 {offsets = [0, 2944], sizes = [8, 128], strides = [1, 1]} : vector<8x3072xf32> to vector<8x128xf32>
    %70 = arith.addf %68, %69 : vector<8x128xf32>
    %c0_10 = arith.constant 0 : index
    %c0_11 = arith.constant 0 : index
    %71 = vector.load %arg4[%c0_10, %c0_11] : memref<8x128xf32, #tpu.memory_space<vmem>>, vector<8x128xf32>
    tpu.vector_store %arg4[%c0_10, %c0_11], %70 {strides = array<i32>} : memref<8x128xf32, #tpu.memory_space<vmem>>, vector<8x128xf32>,
    return
  }
  func.func @transform_0(%arg0: i32) -> (i32, i32) {
    %c0_i32 = arith.constant 0 : i32
    %c0_i32_0 = arith.constant 0 : i32
    return %arg0, %c0_i32 : i32, i32
  }
  func.func @transform_1(%arg0: i32) -> (i32, i32) {
    %c0_i32 = arith.constant 0 : i32
    %c0_i32_0 = arith.constant 0 : i32
    %c0_i32_1 = arith.constant 0 : i32
    return %c0_i32, %c0_i32_0 : i32, i32
  }
  func.func @transform_2(%arg0: i32) -> (i32, i32) {
    %c0_i32 = arith.constant 0 : i32
    %c0_i32_0 = arith.constant 0 : i32
    return %arg0, %c0_i32 : i32, i32
  }
  func.func @transform_3(%arg0: i32) -> (i32, i32) {
    %c0_i32 = arith.constant 0 : i32
    %c0_i32_0 = arith.constant 0 : i32
    return %arg0, %c0_i32 : i32, i32
  }
}

</mosaic_0001>

<llo_original>
// kernel: program_forward.1
$region0: #{program_forward.1}
  #allocation0 [shape = 'u32[]', space=smem, size = 0x4, offset = 0x4, fixed_abs, tag = 'smem constant byte address 0x4 - core index']
  #allocation1 [shape = 'u32[144,128]{1,0:T(1,128)}', space=vmem, size = 0x12000, scoped, tag = 'internal scratch']
  %s0 = inlined_call_operand.vmem [shape: f32[2,3072], index: 0, kind: input, shape index: {}]
  %s1 = inlined_call_operand.vmem [shape: f32[3,3072], index: 1, kind: input, shape index: {}]
  %s2 = inlined_call_operand.vmem [shape: f32[2,3072], index: 2, kind: output, shape index: {0}]
  %s3 = inlined_call_operand.vmem [shape: f32[2,128], index: 3, kind: output, shape index: {1}]
  %4 = xla_tuple %s2, %s3
  %s5 = sld [smem:[#allocation0]]
  $region75: #{program_forward.1} parent=0
    _
  %s7 = ssub.s32 1, %s5
  %s8 = scalar_select 0, %s7, %s5
  $region1: #{program_forward.1} parent=0
    #allocation2 [shape = 'u8[98304]{0}', space=vmem, size = 0x18000, scoped, tag = 'output window, operand 0, single buffered']
    #allocation3 [shape = 'u8[4096]{0}', space=vmem, size = 0x1000, scoped, tag = 'output window, operand 1, single buffered']
    // Predicated region
    $region2: #{program_forward.1} parent=1 // pred_check
      _
    $region3: #{program_forward.1} parent=1 // pred_check_branch
      %10 = sbr.rel (0) target = $region5
    $region4: #{program_forward.1} parent=1 // pred_region
      _
    $region5: #{program_forward.1} parent=1 // pred_fallthru
      _
    // Predicated region
    $region6: #{program_forward.1} parent=1 // pred_check
      _
    $region7: #{program_forward.1} parent=1 // pred_check_branch
      %12 = sbr.rel (0) target = $region9
    $region8: #{program_forward.1} parent=1 // pred_region
      _
    $region9: #{program_forward.1} parent=1 // pred_fallthru
      _
    %v13 = vld [vmem:[%s0] sm:$0xff]
    %v14 = vld [vmem:[%s0 + $0x8] sm:$0xff]
    %v15 = vld [vmem:[%s0 + $0x10] sm:$0xff]
    %v16 = vld [vmem:[%s0 + $0x18] sm:$0xff]
    %v17 = vld [vmem:[%s0 + $0x20] sm:$0xff]
    %v18 = vld [vmem:[%s0 + $0x28] sm:$0xff]
    %v19 = vld [vmem:[%s0 + $0x30] sm:$0xff]
    %v20 = vld [vmem:[%s0 + $0x38] sm:$0xff]
    %v21 = vld [vmem:[%s0 + $0x40] sm:$0xff]
    %v22 = vld [vmem:[%s0 + $0x48] sm:$0xff]
    %v23 = vld [vmem:[%s0 + $0x50] sm:$0xff]
    %v24 = vld [vmem:[%s0 + $0x58] sm:$0xff]
    %v25 = vld [vmem:[%s0 + $0x60] sm:$0xff]
    %v26 = vld [vmem:[%s0 + $0x68] sm:$0xff]
    %v27 = vld [vmem:[%s0 + $0x70] sm:$0xff]
    %v28 = vld [vmem:[%s0 + $0x78] sm:$0xff]
    %v29 = vld [vmem:[%s0 + $0x80] sm:$0xff]
    %v30 = vld [vmem:[%s0 + $0x88] sm:$0xff]
    %v31 = vld [vmem:[%s0 + $0x90] sm:$0xff]
    %v32 = vld [vmem:[%s0 + $0x98] sm:$0xff]
    %v33 = vld [vmem:[%s0 + $0xa0] sm:$0xff]
    %v34 = vld [vmem:[%s0 + $0xa8] sm:$0xff]
    %v35 = vld [vmem:[%s0 + $0xb0] sm:$0xff]
    %v36 = vld [vmem:[%s0 + $0xb8] sm:$0xff]
    %v37 = vld [vmem:[%s1] ss:$4 sm:$0xff]
    %s38 = scalar_lea.vmem %s1, 32
    %v39 = vld [vmem:[%s38] ss:$4 sm:$0xff]
    %s40 = scalar_lea.vmem %s1, 64
    %v41 = vld [vmem:[%s40] ss:$4 sm:$0xff]
    %s42 = scalar_lea.vmem %s1, 1
    %v43 = vld [vmem:[%s42] ss:$4 sm:$0xff]
    %s44 = scalar_lea.vmem %s1, 33
    %v45 = vld [vmem:[%s44] ss:$4 sm:$0xff]
    %s46 = scalar_lea.vmem %s1, 65
    %v47 = vld [vmem:[%s46] ss:$4 sm:$0xff]
    %s48 = scalar_lea.vmem %s1, 2
    %v49 = vld [vmem:[%s48] ss:$4 sm:$0xff]
    %s50 = scalar_lea.vmem %s1, 34
    %v51 = vld [vmem:[%s50] ss:$4 sm:$0xff]
    %s52 = scalar_lea.vmem %s1, 66
    %v53 = vld [vmem:[%s52] ss:$4 sm:$0xff]
    %v54 = vmul.f32 %v13, 2.0
    %v55 = vmul.f32 %v14, 2.0
    %v56 = vmul.f32 %v15, 2.0
    %v57 = vmul.f32 %v16, 2.0
    %v58 = vmul.f32 %v17, 2.0
    %v59 = vmul.f32 %v18, 2.0
    %v60 = vmul.f32 %v19, 2.0
    %v61 = vmul.f32 %v20, 2.0
    %v62 = vmul.f32 %v21, 2.0
    %v63 = vmul.f32 %v22, 2.0
    %v64 = vmul.f32 %v23, 2.0
    %v65 = vmul.f32 %v24, 2.0
    %v66 = vmul.f32 %v25, 2.0
    %v67 = vmul.f32 %v26, 2.0
    %v68 = vmul.f32 %v27, 2.0
    %v69 = vmul.f32 %v28, 2.0
    %v70 = vmul.f32 %v29, 2.0
    %v71 = vmul.f32 %v30, 2.0
    %v72 = vmul.f32 %v31, 2.0
    %v73 = vmul.f32 %v32, 2.0
    %v74 = vmul.f32 %v33, 2.0
    %v75 = vmul.f32 %v34, 2.0
    %v76 = vmul.f32 %v35, 2.0
    %v77 = vmul.f32 %v36, 2.0
    %v78 = vsub.f32 %v54, 1.0
    %v79 = vsub.f32 %v55, 1.0
    %v80 = vsub.f32 %v56, 1.0
    %v81 = vsub.f32 %v57, 1.0
    %v82 = vsub.f32 %v58, 1.0
    %v83 = vsub.f32 %v59, 1.0
    %v84 = vsub.f32 %v60, 1.0
    %v85 = vsub.f32 %v61, 1.0
    %v86 = vsub.f32 %v62, 1.0
    %v87 = vsub.f32 %v63, 1.0
    %v88 = vsub.f32 %v64, 1.0
    %v89 = vsub.f32 %v65, 1.0
    %v90 = vsub.f32 %v66, 1.0
    %v91 = vsub.f32 %v67, 1.0
    %v92 = vsub.f32 %v68, 1.0
    %v93 = vsub.f32 %v69, 1.0
    %v94 = vsub.f32 %v70, 1.0
    %v95 = vsub.f32 %v71, 1.0
    %v96 = vsub.f32 %v72, 1.0
    %v97 = vsub.f32 %v73, 1.0
    %v98 = vsub.f32 %v74, 1.0
    %v99 = vsub.f32 %v75, 1.0
    %v100 = vsub.f32 %v76, 1.0
    %v101 = vsub.f32 %v77, 1.0
    %v105 = vlaneseq
    %v106 = vshrl.u32 %v105, 7
    %v107 = vsub.s32 0, %v106
    %v108 = vrot.slane %v37, %v107
    %v109 = vlaneseq
    %v110 = vshrl.u32 %v109, 7
    %v111 = vsub.s32 1, %v110
    %v112 = vrot.slane %v37, %v111
    %v113 = vlaneseq
    %v114 = vshrl.u32 %v113, 7
    %v115 = vsub.s32 2, %v114
    %v116 = vrot.slane %v37, %v115
    %v117 = vlaneseq
    %v118 = vshrl.u32 %v117, 7
    %v119 = vsub.s32 3, %v118
    %v120 = vrot.slane %v37, %v119
    %v121 = vlaneseq
    %v122 = vshrl.u32 %v121, 7
    %v123 = vsub.s32 4, %v122
    %v124 = vrot.slane %v37, %v123
    %v125 = vlaneseq
    %v126 = vshrl.u32 %v125, 7
    %v127 = vsub.s32 5, %v126
    %v128 = vrot.slane %v37, %v127
    %v129 = vlaneseq
    %v130 = vshrl.u32 %v129, 7
    %v131 = vsub.s32 6, %v130
    %v132 = vrot.slane %v37, %v131
    %v133 = vlaneseq
    %v134 = vshrl.u32 %v133, 7
    %v135 = vsub.s32 7, %v134
    %v136 = vrot.slane %v37, %v135
    %v137 = vlaneseq
    %v138 = vshrl.u32 %v137, 7
    %v139 = vsub.s32 0, %v138
    %v140 = vrot.slane %v39, %v139
    %v141 = vlaneseq
    %v142 = vshrl.u32 %v141, 7
    %v143 = vsub.s32 1, %v142
    %v144 = vrot.slane %v39, %v143
    %v145 = vlaneseq
    %v146 = vshrl.u32 %v145, 7
    %v147 = vsub.s32 2, %v146
    %v148 = vrot.slane %v39, %v147
    %v149 = vlaneseq
    %v150 = vshrl.u32 %v149, 7
    %v151 = vsub.s32 3, %v150
    %v152 = vrot.slane %v39, %v151
    %v153 = vlaneseq
    %v154 = vshrl.u32 %v153, 7
    %v155 = vsub.s32 4, %v154
    %v156 = vrot.slane %v39, %v155
    %v157 = vlaneseq
    %v158 = vshrl.u32 %v157, 7
    %v159 = vsub.s32 5, %v158
    %v160 = vrot.slane %v39, %v159
    %v161 = vlaneseq
    %v162 = vshrl.u32 %v161, 7
    %v163 = vsub.s32 6, %v162
    %v164 = vrot.slane %v39, %v163
    %v165 = vlaneseq
    %v166 = vshrl.u32 %v165, 7
    %v167 = vsub.s32 7, %v166
    %v168 = vrot.slane %v39, %v167
    %v169 = vlaneseq
    %v170 = vshrl.u32 %v169, 7
    %v171 = vsub.s32 0, %v170
    %v172 = vrot.slane %v41, %v171
    %v173 = vlaneseq
    %v174 = vshrl.u32 %v173, 7
    %v175 = vsub.s32 1, %v174
    %v176 = vrot.slane %v41, %v175
    %v177 = vlaneseq
    %v178 = vshrl.u32 %v177, 7
    %v179 = vsub.s32 2, %v178
    %v180 = vrot.slane %v41, %v179
    %v181 = vlaneseq
    %v182 = vshrl.u32 %v181, 7
    %v183 = vsub.s32 3, %v182
    %v184 = vrot.slane %v41, %v183
    %v185 = vlaneseq
    %v186 = vshrl.u32 %v185, 7
    %v187 = vsub.s32 4, %v186
    %v188 = vrot.slane %v41, %v187
    %v189 = vlaneseq
    %v190 = vshrl.u32 %v189, 7
    %v191 = vsub.s32 5, %v190
    %v192 = vrot.slane %v41, %v191
    %v193 = vlaneseq
    %v194 = vshrl.u32 %v193, 7
    %v195 = vsub.s32 6, %v194
    %v196 = vrot.slane %v41, %v195
    %v197 = vlaneseq
    %v198 = vshrl.u32 %v197, 7
    %v199 = vsub.s32 7, %v198
    %v200 = vrot.slane %v41, %v199
    %v201 = vcombine.low %v108, %v112
    %v202 = vcombine.high %v108, %v112
    %v203 = vcombine.low %v116, %v120
    %v204 = vcombine.high %v116, %v120
    %v206 = vunpack.c.l.s4 1983009808
    %v207 = vunpack.c.0.s8 %v206
    %v208 = vlaneseq
    %v209 = vshrl.u32 %v208, 7
    %v210 = vsub.s32 %v207, %v209
    %v211 = vrot.slane %v201, %v210
    %v213 = vunpack.c.l.s4 1983009808
    %v214 = vunpack.c.0.s8 %v213
    %v215 = vlaneseq
    %v216 = vshrl.u32 %v215, 7
    %v217 = vsub.s32 %v214, %v216
    %v218 = vrot.slane %v202, %v217
    %v220 = vunpack.c.l.s4 1983009808
    %v221 = vunpack.c.0.s8 %v220
    %v222 = vlaneseq
    %v223 = vshrl.u32 %v222, 7
    %v224 = vsub.s32 %v221, %v223
    %v225 = vrot.slane %v203, %v224
    %v227 = vunpack.c.l.s4 1983009808
    %v228 = vunpack.c.0.s8 %v227
    %v229 = vlaneseq
    %v230 = vshrl.u32 %v229, 7
    %v231 = vsub.s32 %v228, %v230
    %v232 = vrot.slane %v204, %v231
    %v233 = vcombine.low %v211, %v225
    %v234 = vcombine.high %v211, %v225
    %v235 = vcombine.low %v218, %v232
    %v236 = vcombine.high %v218, %v232
    %v237 = vcombine.low %v124, %v128
    %v238 = vcombine.high %v124, %v128
    %v239 = vcombine.low %v132, %v136
    %v240 = vcombine.high %v132, %v136
    %v242 = vunpack.c.l.s4 1983009808
    %v243 = vunpack.c.0.s8 %v242
    %v244 = vlaneseq
    %v245 = vshrl.u32 %v244, 7
    %v246 = vsub.s32 %v243, %v245
    %v247 = vrot.slane %v237, %v246
    %v249 = vunpack.c.l.s4 1983009808
    %v250 = vunpack.c.0.s8 %v249
    %v251 = vlaneseq
    %v252 = vshrl.u32 %v251, 7
    %v253 = vsub.s32 %v250, %v252
    %v254 = vrot.slane %v238, %v253
    %v256 = vunpack.c.l.s4 1983009808
    %v257 = vunpack.c.0.s8 %v256
    %v258 = vlaneseq
    %v259 = vshrl.u32 %v258, 7
    %v260 = vsub.s32 %v257, %v259
    %v261 = vrot.slane %v239, %v260
    %v263 = vunpack.c.l.s4 1983009808
    %v264 = vunpack.c.0.s8 %v263
    %v265 = vlaneseq
    %v266 = vshrl.u32 %v265, 7
    %v267 = vsub.s32 %v264, %v266
    %v268 = vrot.slane %v240, %v267
    %v269 = vcombine.low %v247, %v261
    %v270 = vcombine.high %v247, %v261
    %v271 = vcombine.low %v254, %v268
    %v272 = vcombine.high %v254, %v268
    %v273 = vcombine.low %v140, %v144
    %v274 = vcombine.high %v140, %v144
    %v275 = vcombine.low %v148, %v152
    %v276 = vcombine.high %v148, %v152
    %v278 = vunpack.c.l.s4 1983009808
    %v279 = vunpack.c.0.s8 %v278
    %v280 = vlaneseq
    %v281 = vshrl.u32 %v280, 7
    %v282 = vsub.s32 %v279, %v281
    %v283 = vrot.slane %v273, %v282
    %v285 = vunpack.c.l.s4 1983009808
    %v286 = vunpack.c.0.s8 %v285
    %v287 = vlaneseq
    %v288 = vshrl.u32 %v287, 7
    %v289 = vsub.s32 %v286, %v288
    %v290 = vrot.slane %v274, %v289
    %v292 = vunpack.c.l.s4 1983009808
    %v293 = vunpack.c.0.s8 %v292
    %v294 = vlaneseq
    %v295 = vshrl.u32 %v294, 7
    %v296 = vsub.s32 %v293, %v295
    %v297 = vrot.slane %v275, %v296
    %v299 = vunpack.c.l.s4 1983009808
    %v300 = vunpack.c.0.s8 %v299
    %v301 = vlaneseq
    %v302 = vshrl.u32 %v301, 7
    %v303 = vsub.s32 %v300, %v302
    %v304 = vrot.slane %v276, %v303
    %v305 = vcombine.low %v283, %v297
    %v306 = vcombine.high %v283, %v297
    %v307 = vcombine.low %v290, %v304
    %v308 = vcombine.high %v290, %v304
    %v309 = vcombine.low %v156, %v160
    %v310 = vcombine.high %v156, %v160
    %v311 = vcombine.low %v164, %v168
    %v312 = vcombine.high %v164, %v168
    %v314 = vunpack.c.l.s4 1983009808
    %v315 = vunpack.c.0.s8 %v314
    %v316 = vlaneseq
    %v317 = vshrl.u32 %v316, 7
    %v318 = vsub.s32 %v315, %v317
    %v319 = vrot.slane %v309, %v318
    %v321 = vunpack.c.l.s4 1983009808
    %v322 = vunpack.c.0.s8 %v321
    %v323 = vlaneseq
    %v324 = vshrl.u32 %v323, 7
    %v325 = vsub.s32 %v322, %v324
    %v326 = vrot.slane %v310, %v325
    %v328 = vunpack.c.l.s4 1983009808
    %v329 = vunpack.c.0.s8 %v328
    %v330 = vlaneseq
    %v331 = vshrl.u32 %v330, 7
    %v332 = vsub.s32 %v329, %v331
    %v333 = vrot.slane %v311, %v332
    %v335 = vunpack.c.l.s4 1983009808
    %v336 = vunpack.c.0.s8 %v335
    %v337 = vlaneseq
    %v338 = vshrl.u32 %v337, 7
    %v339 = vsub.s32 %v336, %v338
    %v340 = vrot.slane %v312, %v339
    %v341 = vcombine.low %v319, %v333
    %v342 = vcombine.high %v319, %v333
    %v343 = vcombine.low %v326, %v340
    %v344 = vcombine.high %v326, %v340
    %v345 = vcombine.low %v172, %v176
    %v346 = vcombine.high %v172, %v176
    %v347 = vcombine.low %v180, %v184
    %v348 = vcombine.high %v180, %v184
    %v350 = vunpack.c.l.s4 1983009808
    %v351 = vunpack.c.0.s8 %v350
    %v352 = vlaneseq
    %v353 = vshrl.u32 %v352, 7
    %v354 = vsub.s32 %v351, %v353
    %v355 = vrot.slane %v345, %v354
    %v357 = vunpack.c.l.s4 1983009808
    %v358 = vunpack.c.0.s8 %v357
    %v359 = vlaneseq
    %v360 = vshrl.u32 %v359, 7
    %v361 = vsub.s32 %v358, %v360
    %v362 = vrot.slane %v346, %v361
    %v364 = vunpack.c.l.s4 1983009808
    %v365 = vunpack.c.0.s8 %v364
    %v366 = vlaneseq
    %v367 = vshrl.u32 %v366, 7
    %v368 = vsub.s32 %v365, %v367
    %v369 = vrot.slane %v347, %v368
    %v371 = vunpack.c.l.s4 1983009808
    %v372 = vunpack.c.0.s8 %v371
    %v373 = vlaneseq
    %v374 = vshrl.u32 %v373, 7
    %v375 = vsub.s32 %v372, %v374
    %v376 = vrot.slane %v348, %v375
    %v377 = vcombine.low %v355, %v369
    %v378 = vcombine.high %v355, %v369
    %v379 = vcombine.low %v362, %v376
    %v380 = vcombine.high %v362, %v376
    %v381 = vcombine.low %v188, %v192
    %v382 = vcombine.high %v188, %v192
    %v383 = vcombine.low %v196, %v200
    %v384 = vcombine.high %v196, %v200
    %v386 = vunpack.c.l.s4 1983009808
    %v387 = vunpack.c.0.s8 %v386
    %v388 = vlaneseq
    %v389 = vshrl.u32 %v388, 7
    %v390 = vsub.s32 %v387, %v389
    %v391 = vrot.slane %v381, %v390
    %v393 = vunpack.c.l.s4 1983009808
    %v394 = vunpack.c.0.s8 %v393
    %v395 = vlaneseq
    %v396 = vshrl.u32 %v395, 7
    %v397 = vsub.s32 %v394, %v396
    %v398 = vrot.slane %v382, %v397
    %v400 = vunpack.c.l.s4 1983009808
    %v401 = vunpack.c.0.s8 %v400
    %v402 = vlaneseq
    %v403 = vshrl.u32 %v402, 7
    %v404 = vsub.s32 %v401, %v403
    %v405 = vrot.slane %v383, %v404
    %v407 = vunpack.c.l.s4 1983009808
    %v408 = vunpack.c.0.s8 %v407
    %v409 = vlaneseq
    %v410 = vshrl.u32 %v409, 7
    %v411 = vsub.s32 %v408, %v410
    %v412 = vrot.slane %v384, %v411
    %v413 = vcombine.low %v391, %v405
    %v414 = vcombine.high %v391, %v405
    %v415 = vcombine.low %v398, %v412
    %v416 = vcombine.high %v398, %v412
    %v441 = vadd.f32 %v78, %v233
    %v442 = vadd.f32 %v79, %v269
    %v443 = vadd.f32 %v80, %v305
    %v444 = vadd.f32 %v81, %v341
    %v445 = vadd.f32 %v82, %v377
    %v446 = vadd.f32 %v83, %v413
    %v447 = vadd.f32 %v84, %v234
    %v448 = vadd.f32 %v85, %v270
    %v449 = vadd.f32 %v86, %v306
    %v450 = vadd.f32 %v87, %v342
    %v451 = vadd.f32 %v88, %v378
    %v452 = vadd.f32 %v89, %v414
    %v453 = vadd.f32 %v90, %v235
    %v454 = vadd.f32 %v91, %v271
    %v455 = vadd.f32 %v92, %v307
    %v456 = vadd.f32 %v93, %v343
    %v457 = vadd.f32 %v94, %v379
    %v458 = vadd.f32 %v95, %v415
    %v459 = vadd.f32 %v96, %v236
    %v460 = vadd.f32 %v97, %v272
    %v461 = vadd.f32 %v98, %v308
    %v462 = vadd.f32 %v99, %v344
    %v463 = vadd.f32 %v100, %v380
    %v464 = vadd.f32 %v101, %v416
    %v465 = vmul.f32 %v78, %v233
    %v466 = vmul.f32 %v79, %v269
    %v467 = vmul.f32 %v80, %v305
    %v468 = vmul.f32 %v81, %v341
    %v469 = vmul.f32 %v82, %v377
    %v470 = vmul.f32 %v83, %v413
    %v471 = vmul.f32 %v84, %v234
    %v472 = vmul.f32 %v85, %v270
    %v473 = vmul.f32 %v86, %v306
    %v474 = vmul.f32 %v87, %v342
    %v475 = vmul.f32 %v88, %v378
    %v476 = vmul.f32 %v89, %v414
    %v477 = vmul.f32 %v90, %v235
    %v478 = vmul.f32 %v91, %v271
    %v479 = vmul.f32 %v92, %v307
    %v480 = vmul.f32 %v93, %v343
    %v481 = vmul.f32 %v94, %v379
    %v482 = vmul.f32 %v95, %v415
    %v483 = vmul.f32 %v96, %v236
    %v484 = vmul.f32 %v97, %v272
    %v485 = vmul.f32 %v98, %v308
    %v486 = vmul.f32 %v99, %v344
    %v487 = vmul.f32 %v100, %v380
    %v488 = vmul.f32 %v101, %v416
    %v489 = vadd.f32 %v465, 1.0
    %v490 = vadd.f32 %v466, 1.0
    %v491 = vadd.f32 %v467, 1.0
    %v492 = vadd.f32 %v468, 1.0
    %v493 = vadd.f32 %v469, 1.0
    %v494 = vadd.f32 %v470, 1.0
    %v495 = vadd.f32 %v471, 1.0
    %v496 = vadd.f32 %v472, 1.0
    %v497 = vadd.f32 %v473, 1.0
    %v498 = vadd.f32 %v474, 1.0
    %v499 = vadd.f32 %v475, 1.0
    %v500 = vadd.f32 %v476, 1.0
    %v501 = vadd.f32 %v477, 1.0
    %v502 = vadd.f32 %v478, 1.0
    %v503 = vadd.f32 %v479, 1.0
    %v504 = vadd.f32 %v480, 1.0
    %v505 = vadd.f32 %v481, 1.0
    %v506 = vadd.f32 %v482, 1.0
    %v507 = vadd.f32 %v483, 1.0
    %v508 = vadd.f32 %v484, 1.0
    %v509 = vadd.f32 %v485, 1.0
    %v510 = vadd.f32 %v486, 1.0
    %v511 = vadd.f32 %v487, 1.0
    %v512 = vadd.f32 %v488, 1.0
    %v513 = vrcp.pop %v489
    %v514 = vmul.f32 %v441, %v513
    %v515 = vrcp.pop %v490
    %v516 = vmul.f32 %v442, %v515
    %v517 = vrcp.pop %v491
    %v518 = vmul.f32 %v443, %v517
    %v519 = vrcp.pop %v492
    %v520 = vmul.f32 %v444, %v519
    %v521 = vrcp.pop %v493
    %v522 = vmul.f32 %v445, %v521
    %v523 = vrcp.pop %v494
    %v524 = vmul.f32 %v446, %v523
    %v525 = vrcp.pop %v495
    %v526 = vmul.f32 %v447, %v525
    %v527 = vrcp.pop %v496
    %v528 = vmul.f32 %v448, %v527
    %v529 = vrcp.pop %v497
    %v530 = vmul.f32 %v449, %v529
    %v531 = vrcp.pop %v498
    %v532 = vmul.f32 %v450, %v531
    %v533 = vrcp.pop %v499
    %v534 = vmul.f32 %v451, %v533
    %v535 = vrcp.pop %v500
    %v536 = vmul.f32 %v452, %v535
    %v537 = vrcp.pop %v501
    %v538 = vmul.f32 %v453, %v537
    %v539 = vrcp.pop %v502
    %v540 = vmul.f32 %v454, %v539
    %v541 = vrcp.pop %v503
    %v542 = vmul.f32 %v455, %v541
    %v543 = vrcp.pop %v504
    %v544 = vmul.f32 %v456, %v543
    %v545 = vrcp.pop %v505
    %v546 = vmul.f32 %v457, %v545
    %v547 = vrcp.pop %v506
    %v548 = vmul.f32 %v458, %v547
    %v549 = vrcp.pop %v507
    %v550 = vmul.f32 %v459, %v549
    %v551 = vrcp.pop %v508
    %v552 = vmul.f32 %v460, %v551
    %v553 = vrcp.pop %v509
    %v554 = vmul.f32 %v461, %v553
    %v555 = vrcp.pop %v510
    %v556 = vmul.f32 %v462, %v555
    %v557 = vrcp.pop %v511
    %v558 = vmul.f32 %v463, %v557
    %v559 = vrcp.pop %v512
    %v560 = vmul.f32 %v464, %v559
    %v564 = vlaneseq
    %v565 = vshrl.u32 %v564, 7
    %v566 = vsub.s32 0, %v565
    %v567 = vrot.slane %v43, %v566
    %v568 = vlaneseq
    %v569 = vshrl.u32 %v568, 7
    %v570 = vsub.s32 1, %v569
    %v571 = vrot.slane %v43, %v570
    %v572 = vlaneseq
    %v573 = vshrl.u32 %v572, 7
    %v574 = vsub.s32 2, %v573
    %v575 = vrot.slane %v43, %v574
    %v576 = vlaneseq
    %v577 = vshrl.u32 %v576, 7
    %v578 = vsub.s32 3, %v577
    %v579 = vrot.slane %v43, %v578
    %v580 = vlaneseq
    %v581 = vshrl.u32 %v580, 7
    %v582 = vsub.s32 4, %v581
    %v583 = vrot.slane %v43, %v582
    %v584 = vlaneseq
    %v585 = vshrl.u32 %v584, 7
    %v586 = vsub.s32 5, %v585
    %v587 = vrot.slane %v43, %v586
    %v588 = vlaneseq
    %v589 = vshrl.u32 %v588, 7
    %v590 = vsub.s32 6, %v589
    %v591 = vrot.slane %v43, %v590
    %v592 = vlaneseq
    %v593 = vshrl.u32 %v592, 7
    %v594 = vsub.s32 7, %v593
    %v595 = vrot.slane %v43, %v594
    %v596 = vlaneseq
    %v597 = vshrl.u32 %v596, 7
    %v598 = vsub.s32 0, %v597
    %v599 = vrot.slane %v45, %v598
    %v600 = vlaneseq
    %v601 = vshrl.u32 %v600, 7
    %v602 = vsub.s32 1, %v601
    %v603 = vrot.slane %v45, %v602
    %v604 = vlaneseq
    %v605 = vshrl.u32 %v604, 7
    %v606 = vsub.s32 2, %v605
    %v607 = vrot.slane %v45, %v606
    %v608 = vlaneseq
    %v609 = vshrl.u32 %v608, 7
    %v610 = vsub.s32 3, %v609
    %v611 = vrot.slane %v45, %v610
    %v612 = vlaneseq
    %v613 = vshrl.u32 %v612, 7
    %v614 = vsub.s32 4, %v613
    %v615 = vrot.slane %v45, %v614
    %v616 = vlaneseq
    %v617 = vshrl.u32 %v616, 7
    %v618 = vsub.s32 5, %v617
    %v619 = vrot.slane %v45, %v618
    %v620 = vlaneseq
    %v621 = vshrl.u32 %v620, 7
    %v622 = vsub.s32 6, %v621
    %v623 = vrot.slane %v45, %v622
    %v624 = vlaneseq
    %v625 = vshrl.u32 %v624, 7
    %v626 = vsub.s32 7, %v625
    %v627 = vrot.slane %v45, %v626
    %v628 = vlaneseq
    %v629 = vshrl.u32 %v628, 7
    %v630 = vsub.s32 0, %v629
    %v631 = vrot.slane %v47, %v630
    %v632 = vlaneseq
    %v633 = vshrl.u32 %v632, 7
    %v634 = vsub.s32 1, %v633
    %v635 = vrot.slane %v47, %v634
    %v636 = vlaneseq
    %v637 = vshrl.u32 %v636, 7
    %v638 = vsub.s32 2, %v637
    %v639 = vrot.slane %v47, %v638
    %v640 = vlaneseq
    %v641 = vshrl.u32 %v640, 7
    %v642 = vsub.s32 3, %v641
    %v643 = vrot.slane %v47, %v642
    %v644 = vlaneseq
    %v645 = vshrl.u32 %v644, 7
    %v646 = vsub.s32 4, %v645
    %v647 = vrot.slane %v47, %v646
    %v648 = vlaneseq
    %v649 = vshrl.u32 %v648, 7
    %v650 = vsub.s32 5, %v649
    %v651 = vrot.slane %v47, %v650
    %v652 = vlaneseq
    %v653 = vshrl.u32 %v652, 7
    %v654 = vsub.s32 6, %v653
    %v655 = vrot.slane %v47, %v654
    %v656 = vlaneseq
    %v657 = vshrl.u32 %v656, 7
    %v658 = vsub.s32 7, %v657
    %v659 = vrot.slane %v47, %v658
    %v708 = vcombine.low %v514, %v526
    %v709 = vcombine.high %v514, %v526
    %v710 = vcombine.low %v538, %v550
    %v711 = vcombine.high %v538, %v550
    %v713 = vunpack.c.l.s4 1983009808
    %v714 = vunpack.c.0.s8 %v713
    %v715 = vlaneseq
    %v716 = vshrl.u32 %v715, 7
    %v717 = vsub.s32 %v714, %v716
    %v718 = vrot.slane %v708, %v717
    %v720 = vunpack.c.l.s4 1983009808
    %v721 = vunpack.c.0.s8 %v720
    %v722 = vlaneseq
    %v723 = vshrl.u32 %v722, 7
    %v724 = vsub.s32 %v721, %v723
    %v725 = vrot.slane %v709, %v724
    %v727 = vunpack.c.l.s4 1983009808
    %v728 = vunpack.c.0.s8 %v727
    %v729 = vlaneseq
    %v730 = vshrl.u32 %v729, 7
    %v731 = vsub.s32 %v728, %v730
    %v732 = vrot.slane %v710, %v731
    %v734 = vunpack.c.l.s4 1983009808
    %v735 = vunpack.c.0.s8 %v734
    %v736 = vlaneseq
    %v737 = vshrl.u32 %v736, 7
    %v738 = vsub.s32 %v735, %v737
    %v739 = vrot.slane %v711, %v738
    %v740 = vcombine.low %v718, %v732
    %v741 = vcombine.high %v718, %v732
    %v742 = vcombine.low %v725, %v739
    %v743 = vcombine.high %v725, %v739
    %v744 = vcombine.low %v516, %v528
    %v745 = vcombine.high %v516, %v528
    %v746 = vcombine.low %v540, %v552
    %v747 = vcombine.high %v540, %v552
    %v749 = vunpack.c.l.s4 1983009808
    %v750 = vunpack.c.0.s8 %v749
    %v751 = vlaneseq
    %v752 = vshrl.u32 %v751, 7
    %v753 = vsub.s32 %v750, %v752
    %v754 = vrot.slane %v744, %v753
    %v756 = vunpack.c.l.s4 1983009808
    %v757 = vunpack.c.0.s8 %v756
    %v758 = vlaneseq
    %v759 = vshrl.u32 %v758, 7
    %v760 = vsub.s32 %v757, %v759
    %v761 = vrot.slane %v745, %v760
    %v763 = vunpack.c.l.s4 1983009808
    %v764 = vunpack.c.0.s8 %v763
    %v765 = vlaneseq
    %v766 = vshrl.u32 %v765, 7
    %v767 = vsub.s32 %v764, %v766
    %v768 = vrot.slane %v746, %v767
    %v770 = vunpack.c.l.s4 1983009808
    %v771 = vunpack.c.0.s8 %v770
    %v772 = vlaneseq
    %v773 = vshrl.u32 %v772, 7
    %v774 = vsub.s32 %v771, %v773
    %v775 = vrot.slane %v747, %v774
    %v776 = vcombine.low %v754, %v768
    %v777 = vcombine.high %v754, %v768
    %v778 = vcombine.low %v761, %v775
    %v779 = vcombine.high %v761, %v775
    %v780 = vcombine.low %v518, %v530
    %v781 = vcombine.high %v518, %v530
    %v782 = vcombine.low %v542, %v554
    %v783 = vcombine.high %v542, %v554
    %v785 = vunpack.c.l.s4 1983009808
    %v786 = vunpack.c.0.s8 %v785
    %v787 = vlaneseq
    %v788 = vshrl.u32 %v787, 7
    %v789 = vsub.s32 %v786, %v788
    %v790 = vrot.slane %v780, %v789
    %v792 = vunpack.c.l.s4 1983009808
    %v793 = vunpack.c.0.s8 %v792
    %v794 = vlaneseq
    %v795 = vshrl.u32 %v794, 7
    %v796 = vsub.s32 %v793, %v795
    %v797 = vrot.slane %v781, %v796
    %v799 = vunpack.c.l.s4 1983009808
    %v800 = vunpack.c.0.s8 %v799
    %v801 = vlaneseq
    %v802 = vshrl.u32 %v801, 7
    %v803 = vsub.s32 %v800, %v802
    %v804 = vrot.slane %v782, %v803
    %v806 = vunpack.c.l.s4 1983009808
    %v807 = vunpack.c.0.s8 %v806
    %v808 = vlaneseq
    %v809 = vshrl.u32 %v808, 7
    %v810 = vsub.s32 %v807, %v809
    %v811 = vrot.slane %v783, %v810
    %v812 = vcombine.low %v790, %v804
    %v813 = vcombine.high %v790, %v804
    %v814 = vcombine.low %v797, %v811
    %v815 = vcombine.high %v797, %v811
    %v816 = vcombine.low %v520, %v532
    %v817 = vcombine.high %v520, %v532
    %v818 = vcombine.low %v544, %v556
    %v819 = vcombine.high %v544, %v556
    %v821 = vunpack.c.l.s4 1983009808
    %v822 = vunpack.c.0.s8 %v821
    %v823 = vlaneseq
    %v824 = vshrl.u32 %v823, 7
    %v825 = vsub.s32 %v822, %v824
    %v826 = vrot.slane %v816, %v825
    %v828 = vunpack.c.l.s4 1983009808
    %v829 = vunpack.c.0.s8 %v828
    %v830 = vlaneseq
    %v831 = vshrl.u32 %v830, 7
    %v832 = vsub.s32 %v829, %v831
    %v833 = vrot.slane %v817, %v832
    %v835 = vunpack.c.l.s4 1983009808
    %v836 = vunpack.c.0.s8 %v835
    %v837 = vlaneseq
    %v838 = vshrl.u32 %v837, 7
    %v839 = vsub.s32 %v836, %v838
    %v840 = vrot.slane %v818, %v839
    %v842 = vunpack.c.l.s4 1983009808
    %v843 = vunpack.c.0.s8 %v842
    %v844 = vlaneseq
    %v845 = vshrl.u32 %v844, 7
    %v846 = vsub.s32 %v843, %v845
    %v847 = vrot.slane %v819, %v846
    %v848 = vcombine.low %v826, %v840
    %v849 = vcombine.high %v826, %v840
    %v850 = vcombine.low %v833, %v847
    %v851 = vcombine.high %v833, %v847
    %v852 = vcombine.low %v522, %v534
    %v853 = vcombine.high %v522, %v534
    %v854 = vcombine.low %v546, %v558
    %v855 = vcombine.high %v546, %v558
    %v857 = vunpack.c.l.s4 1983009808
    %v858 = vunpack.c.0.s8 %v857
    %v859 = vlaneseq
    %v860 = vshrl.u32 %v859, 7
    %v861 = vsub.s32 %v858, %v860
    %v862 = vrot.slane %v852, %v861
    %v864 = vunpack.c.l.s4 1983009808
    %v865 = vunpack.c.0.s8 %v864
    %v866 = vlaneseq
    %v867 = vshrl.u32 %v866, 7
    %v868 = vsub.s32 %v865, %v867
    %v869 = vrot.slane %v853, %v868
    %v871 = vunpack.c.l.s4 1983009808
    %v872 = vunpack.c.0.s8 %v871
    %v873 = vlaneseq
    %v874 = vshrl.u32 %v873, 7
    %v875 = vsub.s32 %v872, %v874
    %v876 = vrot.slane %v854, %v875
    %v878 = vunpack.c.l.s4 1983009808
    %v879 = vunpack.c.0.s8 %v878
    %v880 = vlaneseq
    %v881 = vshrl.u32 %v880, 7
    %v882 = vsub.s32 %v879, %v881
    %v883 = vrot.slane %v855, %v882
    %v884 = vcombine.low %v862, %v876
    %v885 = vcombine.high %v862, %v876
    %v886 = vcombine.low %v869, %v883
    %v887 = vcombine.high %v869, %v883
    %v888 = vcombine.low %v524, %v536
    %v889 = vcombine.high %v524, %v536
    %v890 = vcombine.low %v548, %v560
    %v891 = vcombine.high %v548, %v560
    %v893 = vunpack.c.l.s4 1983009808
    %v894 = vunpack.c.0.s8 %v893
    %v895 = vlaneseq
    %v896 = vshrl.u32 %v895, 7
    %v897 = vsub.s32 %v894, %v896
    %v898 = vrot.slane %v888, %v897
    %v900 = vunpack.c.l.s4 1983009808
    %v901 = vunpack.c.0.s8 %v900
    %v902 = vlaneseq
    %v903 = vshrl.u32 %v902, 7
    %v904 = vsub.s32 %v901, %v903
    %v905 = vrot.slane %v889, %v904
    %v907 = vunpack.c.l.s4 1983009808
    %v908 = vunpack.c.0.s8 %v907
    %v909 = vlaneseq
    %v910 = vshrl.u32 %v909, 7
    %v911 = vsub.s32 %v908, %v910
    %v912 = vrot.slane %v890, %v911
    %v914 = vunpack.c.l.s4 1983009808
    %v915 = vunpack.c.0.s8 %v914
    %v916 = vlaneseq
    %v917 = vshrl.u32 %v916, 7
    %v918 = vsub.s32 %v915, %v917
    %v919 = vrot.slane %v891, %v918
    %v920 = vcombine.low %v898, %v912
    %v921 = vcombine.high %v898, %v912
    %v922 = vcombine.low %v905, %v919
    %v923 = vcombine.high %v905, %v919
    %v948 = vmul.f32 %v567, %v740
    %v949 = vmul.f32 %v571, %v741
    %v950 = vmul.f32 %v575, %v742
    %v951 = vmul.f32 %v579, %v743
    %v952 = vmul.f32 %v583, %v776
    %v953 = vmul.f32 %v587, %v777
    %v954 = vmul.f32 %v591, %v778
    %v955 = vmul.f32 %v595, %v779
    %v956 = vmul.f32 %v599, %v812
    %v957 = vmul.f32 %v603, %v813
    %v958 = vmul.f32 %v607, %v814
    %v959 = vmul.f32 %v611, %v815
    %v960 = vmul.f32 %v615, %v848
    %v961 = vmul.f32 %v619, %v849
    %v962 = vmul.f32 %v623, %v850
    %v963 = vmul.f32 %v627, %v851
    %v964 = vmul.f32 %v631, %v884
    %v965 = vmul.f32 %v635, %v885
    %v966 = vmul.f32 %v639, %v886
    %v967 = vmul.f32 %v643, %v887
    %v968 = vmul.f32 %v647, %v920
    %v969 = vmul.f32 %v651, %v921
    %v970 = vmul.f32 %v655, %v922
    %v971 = vmul.f32 %v659, %v923
    %v975 = vlaneseq
    %v976 = vshrl.u32 %v975, 7
    %v977 = vsub.s32 0, %v976
    %v978 = vrot.slane %v49, %v977
    %v979 = vlaneseq
    %v980 = vshrl.u32 %v979, 7
    %v981 = vsub.s32 1, %v980
    %v982 = vrot.slane %v49, %v981
    %v983 = vlaneseq
    %v984 = vshrl.u32 %v983, 7
    %v985 = vsub.s32 2, %v984
    %v986 = vrot.slane %v49, %v985
    %v987 = vlaneseq
    %v988 = vshrl.u32 %v987, 7
    %v989 = vsub.s32 3, %v988
    %v990 = vrot.slane %v49, %v989
    %v991 = vlaneseq
    %v992 = vshrl.u32 %v991, 7
    %v993 = vsub.s32 4, %v992
    %v994 = vrot.slane %v49, %v993
    %v995 = vlaneseq
    %v996 = vshrl.u32 %v995, 7
    %v997 = vsub.s32 5, %v996
    %v998 = vrot.slane %v49, %v997
    %v999 = vlaneseq
    %v1000 = vshrl.u32 %v999, 7
    %v1001 = vsub.s32 6, %v1000
    %v1002 = vrot.slane %v49, %v1001
    %v1003 = vlaneseq
    %v1004 = vshrl.u32 %v1003, 7
    %v1005 = vsub.s32 7, %v1004
    %v1006 = vrot.slane %v49, %v1005
    %v1007 = vlaneseq
    %v1008 = vshrl.u32 %v1007, 7
    %v1009 = vsub.s32 0, %v1008
    %v1010 = vrot.slane %v51, %v1009
    %v1011 = vlaneseq
    %v1012 = vshrl.u32 %v1011, 7
    %v1013 = vsub.s32 1, %v1012
    %v1014 = vrot.slane %v51, %v1013
    %v1015 = vlaneseq
    %v1016 = vshrl.u32 %v1015, 7
    %v1017 = vsub.s32 2, %v1016
    %v1018 = vrot.slane %v51, %v1017
    %v1019 = vlaneseq
    %v1020 = vshrl.u32 %v1019, 7
    %v1021 = vsub.s32 3, %v1020
    %v1022 = vrot.slane %v51, %v1021
    %v1023 = vlaneseq
    %v1024 = vshrl.u32 %v1023, 7
    %v1025 = vsub.s32 4, %v1024
    %v1026 = vrot.slane %v51, %v1025
    %v1027 = vlaneseq
    %v1028 = vshrl.u32 %v1027, 7
    %v1029 = vsub.s32 5, %v1028
    %v1030 = vrot.slane %v51, %v1029
    %v1031 = vlaneseq
    %v1032 = vshrl.u32 %v1031, 7
    %v1033 = vsub.s32 6, %v1032
    %v1034 = vrot.slane %v51, %v1033
    %v1035 = vlaneseq
    %v1036 = vshrl.u32 %v1035, 7
    %v1037 = vsub.s32 7, %v1036
    %v1038 = vrot.slane %v51, %v1037
    %v1039 = vlaneseq
    %v1040 = vshrl.u32 %v1039, 7
    %v1041 = vsub.s32 0, %v1040
    %v1042 = vrot.slane %v53, %v1041
    %v1043 = vlaneseq
    %v1044 = vshrl.u32 %v1043, 7
    %v1045 = vsub.s32 1, %v1044
    %v1046 = vrot.slane %v53, %v1045
    %v1047 = vlaneseq
    %v1048 = vshrl.u32 %v1047, 7
    %v1049 = vsub.s32 2, %v1048
    %v1050 = vrot.slane %v53, %v1049
    %v1051 = vlaneseq
    %v1052 = vshrl.u32 %v1051, 7
    %v1053 = vsub.s32 3, %v1052
    %v1054 = vrot.slane %v53, %v1053
    %v1055 = vlaneseq
    %v1056 = vshrl.u32 %v1055, 7
    %v1057 = vsub.s32 4, %v1056
    %v1058 = vrot.slane %v53, %v1057
    %v1059 = vlaneseq
    %v1060 = vshrl.u32 %v1059, 7
    %v1061 = vsub.s32 5, %v1060
    %v1062 = vrot.slane %v53, %v1061
    %v1063 = vlaneseq
    %v1064 = vshrl.u32 %v1063, 7
    %v1065 = vsub.s32 6, %v1064
    %v1066 = vrot.slane %v53, %v1065
    %v1067 = vlaneseq
    %v1068 = vshrl.u32 %v1067, 7
    %v1069 = vsub.s32 7, %v1068
    %v1070 = vrot.slane %v53, %v1069
    %v1095 = vadd.f32 %v948, %v978
    %v1096 = vadd.f32 %v949, %v982
    %v1097 = vadd.f32 %v950, %v986
    %v1098 = vadd.f32 %v951, %v990
    %v1099 = vadd.f32 %v952, %v994
    %v1100 = vadd.f32 %v953, %v998
    %v1101 = vadd.f32 %v954, %v1002
    %v1102 = vadd.f32 %v955, %v1006
    %v1103 = vadd.f32 %v956, %v1010
    %v1104 = vadd.f32 %v957, %v1014
    %v1105 = vadd.f32 %v958, %v1018
    %v1106 = vadd.f32 %v959, %v1022
    %v1107 = vadd.f32 %v960, %v1026
    %v1108 = vadd.f32 %v961, %v1030
    %v1109 = vadd.f32 %v962, %v1034
    %v1110 = vadd.f32 %v963, %v1038
    %v1111 = vadd.f32 %v964, %v1042
    %v1112 = vadd.f32 %v965, %v1046
    %v1113 = vadd.f32 %v966, %v1050
    %v1114 = vadd.f32 %v967, %v1054
    %v1115 = vadd.f32 %v968, %v1058
    %v1116 = vadd.f32 %v969, %v1062
    %v1117 = vadd.f32 %v970, %v1066
    %v1118 = vadd.f32 %v971, %v1070
    %v1143 = vcombine.low %v1095, %v1096
    %v1144 = vcombine.high %v1095, %v1096
    %v1145 = vcombine.low %v1097, %v1098
    %v1146 = vcombine.high %v1097, %v1098
    %v1148 = vunpack.c.l.s4 1983009808
    %v1149 = vunpack.c.0.s8 %v1148
    %v1150 = vlaneseq
    %v1151 = vshrl.u32 %v1150, 7
    %v1152 = vsub.s32 %v1149, %v1151
    %v1153 = vrot.slane %v1143, %v1152
    %v1155 = vunpack.c.l.s4 1983009808
    %v1156 = vunpack.c.0.s8 %v1155
    %v1157 = vlaneseq
    %v1158 = vshrl.u32 %v1157, 7
    %v1159 = vsub.s32 %v1156, %v1158
    %v1160 = vrot.slane %v1144, %v1159
    %v1162 = vunpack.c.l.s4 1983009808
    %v1163 = vunpack.c.0.s8 %v1162
    %v1164 = vlaneseq
    %v1165 = vshrl.u32 %v1164, 7
    %v1166 = vsub.s32 %v1163, %v1165
    %v1167 = vrot.slane %v1145, %v1166
    %v1169 = vunpack.c.l.s4 1983009808
    %v1170 = vunpack.c.0.s8 %v1169
    %v1171 = vlaneseq
    %v1172 = vshrl.u32 %v1171, 7
    %v1173 = vsub.s32 %v1170, %v1172
    %v1174 = vrot.slane %v1146, %v1173
    %v1175 = vcombine.low %v1153, %v1167
    %v1176 = vcombine.high %v1153, %v1167
    %v1177 = vcombine.low %v1160, %v1174
    %v1178 = vcombine.high %v1160, %v1174
    %v1179 = vcombine.low %v1099, %v1100
    %v1180 = vcombine.high %v1099, %v1100
    %v1181 = vcombine.low %v1101, %v1102
    %v1182 = vcombine.high %v1101, %v1102
    %v1184 = vunpack.c.l.s4 1983009808
    %v1185 = vunpack.c.0.s8 %v1184
    %v1186 = vlaneseq
    %v1187 = vshrl.u32 %v1186, 7
    %v1188 = vsub.s32 %v1185, %v1187
    %v1189 = vrot.slane %v1179, %v1188
    %v1191 = vunpack.c.l.s4 1983009808
    %v1192 = vunpack.c.0.s8 %v1191
    %v1193 = vlaneseq
    %v1194 = vshrl.u32 %v1193, 7
    %v1195 = vsub.s32 %v1192, %v1194
    %v1196 = vrot.slane %v1180, %v1195
    %v1198 = vunpack.c.l.s4 1983009808
    %v1199 = vunpack.c.0.s8 %v1198
    %v1200 = vlaneseq
    %v1201 = vshrl.u32 %v1200, 7
    %v1202 = vsub.s32 %v1199, %v1201
    %v1203 = vrot.slane %v1181, %v1202
    %v1205 = vunpack.c.l.s4 1983009808
    %v1206 = vunpack.c.0.s8 %v1205
    %v1207 = vlaneseq
    %v1208 = vshrl.u32 %v1207, 7
    %v1209 = vsub.s32 %v1206, %v1208
    %v1210 = vrot.slane %v1182, %v1209
    %v1211 = vcombine.low %v1189, %v1203
    %v1212 = vcombine.high %v1189, %v1203
    %v1213 = vcombine.low %v1196, %v1210
    %v1214 = vcombine.high %v1196, %v1210
    %v1215 = vcombine.low %v1103, %v1104
    %v1216 = vcombine.high %v1103, %v1104
    %v1217 = vcombine.low %v1105, %v1106
    %v1218 = vcombine.high %v1105, %v1106
    %v1220 = vunpack.c.l.s4 1983009808
    %v1221 = vunpack.c.0.s8 %v1220
    %v1222 = vlaneseq
    %v1223 = vshrl.u32 %v1222, 7
    %v1224 = vsub.s32 %v1221, %v1223
    %v1225 = vrot.slane %v1215, %v1224
    %v1227 = vunpack.c.l.s4 1983009808
    %v1228 = vunpack.c.0.s8 %v1227
    %v1229 = vlaneseq
    %v1230 = vshrl.u32 %v1229, 7
    %v1231 = vsub.s32 %v1228, %v1230
    %v1232 = vrot.slane %v1216, %v1231
    %v1234 = vunpack.c.l.s4 1983009808
    %v1235 = vunpack.c.0.s8 %v1234
    %v1236 = vlaneseq
    %v1237 = vshrl.u32 %v1236, 7
    %v1238 = vsub.s32 %v1235, %v1237
    %v1239 = vrot.slane %v1217, %v1238
    %v1241 = vunpack.c.l.s4 1983009808
    %v1242 = vunpack.c.0.s8 %v1241
    %v1243 = vlaneseq
    %v1244 = vshrl.u32 %v1243, 7
    %v1245 = vsub.s32 %v1242, %v1244
    %v1246 = vrot.slane %v1218, %v1245
    %v1247 = vcombine.low %v1225, %v1239
    %v1248 = vcombine.high %v1225, %v1239
    %v1249 = vcombine.low %v1232, %v1246
    %v1250 = vcombine.high %v1232, %v1246
    %v1251 = vcombine.low %v1107, %v1108
    %v1252 = vcombine.high %v1107, %v1108
    %v1253 = vcombine.low %v1109, %v1110
    %v1254 = vcombine.high %v1109, %v1110
    %v1256 = vunpack.c.l.s4 1983009808
    %v1257 = vunpack.c.0.s8 %v1256
    %v1258 = vlaneseq
    %v1259 = vshrl.u32 %v1258, 7
    %v1260 = vsub.s32 %v1257, %v1259
    %v1261 = vrot.slane %v1251, %v1260
    %v1263 = vunpack.c.l.s4 1983009808
    %v1264 = vunpack.c.0.s8 %v1263
    %v1265 = vlaneseq
    %v1266 = vshrl.u32 %v1265, 7
    %v1267 = vsub.s32 %v1264, %v1266
    %v1268 = vrot.slane %v1252, %v1267
    %v1270 = vunpack.c.l.s4 1983009808
    %v1271 = vunpack.c.0.s8 %v1270
    %v1272 = vlaneseq
    %v1273 = vshrl.u32 %v1272, 7
    %v1274 = vsub.s32 %v1271, %v1273
    %v1275 = vrot.slane %v1253, %v1274
    %v1277 = vunpack.c.l.s4 1983009808
    %v1278 = vunpack.c.0.s8 %v1277
    %v1279 = vlaneseq
    %v1280 = vshrl.u32 %v1279, 7
    %v1281 = vsub.s32 %v1278, %v1280
    %v1282 = vrot.slane %v1254, %v1281
    %v1283 = vcombine.low %v1261, %v1275
    %v1284 = vcombine.high %v1261, %v1275
    %v1285 = vcombine.low %v1268, %v1282
    %v1286 = vcombine.high %v1268, %v1282
    %v1287 = vcombine.low %v1111, %v1112
    %v1288 = vcombine.high %v1111, %v1112
    %v1289 = vcombine.low %v1113, %v1114
    %v1290 = vcombine.high %v1113, %v1114
    %v1292 = vunpack.c.l.s4 1983009808
    %v1293 = vunpack.c.0.s8 %v1292
    %v1294 = vlaneseq
    %v1295 = vshrl.u32 %v1294, 7
    %v1296 = vsub.s32 %v1293, %v1295
    %v1297 = vrot.slane %v1287, %v1296
    %v1299 = vunpack.c.l.s4 1983009808
    %v1300 = vunpack.c.0.s8 %v1299
    %v1301 = vlaneseq
    %v1302 = vshrl.u32 %v1301, 7
    %v1303 = vsub.s32 %v1300, %v1302
    %v1304 = vrot.slane %v1288, %v1303
    %v1306 = vunpack.c.l.s4 1983009808
    %v1307 = vunpack.c.0.s8 %v1306
    %v1308 = vlaneseq
    %v1309 = vshrl.u32 %v1308, 7
    %v1310 = vsub.s32 %v1307, %v1309
    %v1311 = vrot.slane %v1289, %v1310
    %v1313 = vunpack.c.l.s4 1983009808
    %v1314 = vunpack.c.0.s8 %v1313
    %v1315 = vlaneseq
    %v1316 = vshrl.u32 %v1315, 7
    %v1317 = vsub.s32 %v1314, %v1316
    %v1318 = vrot.slane %v1290, %v1317
    %v1319 = vcombine.low %v1297, %v1311
    %v1320 = vcombine.high %v1297, %v1311
    %v1321 = vcombine.low %v1304, %v1318
    %v1322 = vcombine.high %v1304, %v1318
    %v1323 = vcombine.low %v1115, %v1116
    %v1324 = vcombine.high %v1115, %v1116
    %v1325 = vcombine.low %v1117, %v1118
    %v1326 = vcombine.high %v1117, %v1118
    %v1328 = vunpack.c.l.s4 1983009808
    %v1329 = vunpack.c.0.s8 %v1328
    %v1330 = vlaneseq
    %v1331 = vshrl.u32 %v1330, 7
    %v1332 = vsub.s32 %v1329, %v1331
    %v1333 = vrot.slane %v1323, %v1332
    %v1335 = vunpack.c.l.s4 1983009808
    %v1336 = vunpack.c.0.s8 %v1335
    %v1337 = vlaneseq
    %v1338 = vshrl.u32 %v1337, 7
    %v1339 = vsub.s32 %v1336, %v1338
    %v1340 = vrot.slane %v1324, %v1339
    %v1342 = vunpack.c.l.s4 1983009808
    %v1343 = vunpack.c.0.s8 %v1342
    %v1344 = vlaneseq
    %v1345 = vshrl.u32 %v1344, 7
    %v1346 = vsub.s32 %v1343, %v1345
    %v1347 = vrot.slane %v1325, %v1346
    %v1349 = vunpack.c.l.s4 1983009808
    %v1350 = vunpack.c.0.s8 %v1349
    %v1351 = vlaneseq
    %v1352 = vshrl.u32 %v1351, 7
    %v1353 = vsub.s32 %v1350, %v1352
    %v1354 = vrot.slane %v1326, %v1353
    %v1355 = vcombine.low %v1333, %v1347
    %v1356 = vcombine.high %v1333, %v1347
    %v1357 = vcombine.low %v1340, %v1354
    %v1358 = vcombine.high %v1340, %v1354
    %1383 = vst [vmem:[#allocation2] sm:$0xff] %v1175
    %1384 = vst [vmem:[#allocation2 + $0x8] sm:$0xff] %v1211
    %1385 = vst [vmem:[#allocation2 + $0x10] sm:$0xff] %v1247
    %1386 = vst [vmem:[#allocation2 + $0x18] sm:$0xff] %v1283
    %1387 = vst [vmem:[#allocation2 + $0x20] sm:$0xff] %v1319
    %1388 = vst [vmem:[#allocation2 + $0x28] sm:$0xff] %v1355
    %1389 = vst [vmem:[#allocation2 + $0x30] sm:$0xff] %v1176
    %1390 = vst [vmem:[#allocation2 + $0x38] sm:$0xff] %v1212
    %1391 = vst [vmem:[#allocation2 + $0x40] sm:$0xff] %v1248
    %1392 = vst [vmem:[#allocation2 + $0x48] sm:$0xff] %v1284
    %1393 = vst [vmem:[#allocation2 + $0x50] sm:$0xff] %v1320
    %1394 = vst [vmem:[#allocation2 + $0x58] sm:$0xff] %v1356
    %1395 = vst [vmem:[#allocation2 + $0x60] sm:$0xff] %v1177
    %1396 = vst [vmem:[#allocation2 + $0x68] sm:$0xff] %v1213
    %1397 = vst [vmem:[#allocation2 + $0x70] sm:$0xff] %v1249
    %1398 = vst [vmem:[#allocation2 + $0x78] sm:$0xff] %v1285
    %1399 = vst [vmem:[#allocation2 + $0x80] sm:$0xff] %v1321
    %1400 = vst [vmem:[#allocation2 + $0x88] sm:$0xff] %v1357
    %1401 = vst [vmem:[#allocation2 + $0x90] sm:$0xff] %v1178
    %1402 = vst [vmem:[#allocation2 + $0x98] sm:$0xff] %v1214
    %1403 = vst [vmem:[#allocation2 + $0xa0] sm:$0xff] %v1250
    %1404 = vst [vmem:[#allocation2 + $0xa8] sm:$0xff] %v1286
    %1405 = vst [vmem:[#allocation2 + $0xb0] sm:$0xff] %v1322
    %1406 = vst [vmem:[#allocation2 + $0xb8] sm:$0xff] %v1358
    %vm1407 = vcmp.eq.f32.partialorder %v1095, 0.0
    %vm1408 = vcmp.eq.f32.partialorder %v1096, 0.0
    %vm1409 = vcmp.eq.f32.partialorder %v1097, 0.0
    %vm1410 = vcmp.eq.f32.partialorder %v1098, 0.0
    %vm1411 = vcmp.eq.f32.partialorder %v1099, 0.0
    %vm1412 = vcmp.eq.f32.partialorder %v1100, 0.0
    %vm1413 = vcmp.eq.f32.partialorder %v1101, 0.0
    %vm1414 = vcmp.eq.f32.partialorder %v1102, 0.0
    %vm1415 = vcmp.eq.f32.partialorder %v1103, 0.0
    %vm1416 = vcmp.eq.f32.partialorder %v1104, 0.0
    %vm1417 = vcmp.eq.f32.partialorder %v1105, 0.0
    %vm1418 = vcmp.eq.f32.partialorder %v1106, 0.0
    %vm1419 = vcmp.eq.f32.partialorder %v1107, 0.0
    %vm1420 = vcmp.eq.f32.partialorder %v1108, 0.0
    %vm1421 = vcmp.eq.f32.partialorder %v1109, 0.0
    %vm1422 = vcmp.eq.f32.partialorder %v1110, 0.0
    %vm1423 = vcmp.eq.f32.partialorder %v1111, 0.0
    %vm1424 = vcmp.eq.f32.partialorder %v1112, 0.0
    %vm1425 = vcmp.eq.f32.partialorder %v1113, 0.0
    %vm1426 = vcmp.eq.f32.partialorder %v1114, 0.0
    %vm1427 = vcmp.eq.f32.partialorder %v1115, 0.0
    %vm1428 = vcmp.eq.f32.partialorder %v1116, 0.0
    %vm1429 = vcmp.eq.f32.partialorder %v1117, 0.0
    %vm1430 = vcmp.eq.f32.partialorder %v1118, 0.0
    %v1431 = vsel %vm1407, 1, 0
    %v1432 = vsel %vm1408, 1, 0
    %v1433 = vsel %vm1409, 1, 0
    %v1434 = vsel %vm1410, 1, 0
    %v1435 = vsel %vm1411, 1, 0
    %v1436 = vsel %vm1412, 1, 0
    %v1437 = vsel %vm1413, 1, 0
    %v1438 = vsel %vm1414, 1, 0
    %v1439 = vsel %vm1415, 1, 0
    %v1440 = vsel %vm1416, 1, 0
    %v1441 = vsel %vm1417, 1, 0
    %v1442 = vsel %vm1418, 1, 0
    %v1443 = vsel %vm1419, 1, 0
    %v1444 = vsel %vm1420, 1, 0
    %v1445 = vsel %vm1421, 1, 0
    %v1446 = vsel %vm1422, 1, 0
    %v1447 = vsel %vm1423, 1, 0
    %v1448 = vsel %vm1424, 1, 0
    %v1449 = vsel %vm1425, 1, 0
    %v1450 = vsel %vm1426, 1, 0
    %v1451 = vsel %vm1427, 1, 0
    %v1452 = vsel %vm1428, 1, 0
    %v1453 = vsel %vm1429, 1, 0
    %v1454 = vsel %vm1430, 1, 0
    %v1455 = vcvt.s32.f32 %v1431
    %v1456 = vcvt.s32.f32 %v1432
    %v1457 = vcvt.s32.f32 %v1433
    %v1458 = vcvt.s32.f32 %v1434
    %v1459 = vcvt.s32.f32 %v1435
    %v1460 = vcvt.s32.f32 %v1436
    %v1461 = vcvt.s32.f32 %v1437
    %v1462 = vcvt.s32.f32 %v1438
    %v1463 = vcvt.s32.f32 %v1439
    %v1464 = vcvt.s32.f32 %v1440
    %v1465 = vcvt.s32.f32 %v1441
    %v1466 = vcvt.s32.f32 %v1442
    %v1467 = vcvt.s32.f32 %v1443
    %v1468 = vcvt.s32.f32 %v1444
    %v1469 = vcvt.s32.f32 %v1445
    %v1470 = vcvt.s32.f32 %v1446
    %v1471 = vcvt.s32.f32 %v1447
    %v1472 = vcvt.s32.f32 %v1448
    %v1473 = vcvt.s32.f32 %v1449
    %v1474 = vcvt.s32.f32 %v1450
    %v1475 = vcvt.s32.f32 %v1451
    %v1476 = vcvt.s32.f32 %v1452
    %v1477 = vcvt.s32.f32 %v1453
    %v1478 = vcvt.s32.f32 %v1454
    %v1479 = vadd.f32 %v1455, %v1456
    %v1480 = vadd.f32 %v1479, %v1457
    %v1481 = vadd.f32 %v1480, %v1458
    %v1482 = vadd.f32 %v1481, %v1459
    %v1483 = vadd.f32 %v1482, %v1460
    %v1484 = vadd.f32 %v1483, %v1461
    %v1485 = vadd.f32 %v1484, %v1462
    %v1486 = vadd.f32 %v1485, %v1463
    %v1487 = vadd.f32 %v1486, %v1464
    %v1488 = vadd.f32 %v1487, %v1465
    %v1489 = vadd.f32 %v1488, %v1466
    %v1490 = vadd.f32 %v1489, %v1467
    %v1491 = vadd.f32 %v1490, %v1468
    %v1492 = vadd.f32 %v1491, %v1469
    %v1493 = vadd.f32 %v1492, %v1470
    %v1494 = vadd.f32 %v1493, %v1471
    %v1495 = vadd.f32 %v1494, %v1472
    %v1496 = vadd.f32 %v1495, %v1473
    %v1497 = vadd.f32 %v1496, %v1474
    %v1498 = vadd.f32 %v1497, %v1475
    %v1499 = vadd.f32 %v1498, %v1476
    %v1500 = vadd.f32 %v1499, %v1477
    %v1501 = vadd.f32 %v1500, %v1478
    %1502 = vst [vmem:[#allocation3] sm:$0xff] %v1501
    // Predicated region
    $region10: #{program_forward.1} parent=1 // pred_check
      _
    $region11: #{program_forward.1} parent=1 // pred_check_branch
      %1504 = sbr.rel (0) target = $region13
    $region12: #{program_forward.1} parent=1 // pred_region
      // Predicated region
      $region14: #{program_forward.1} parent=12 // pred_check
        _
      $region15: #{program_forward.1} parent=12 // pred_check_branch
        %1506 = sbr.rel (0) target = $region17
      $region16: #{program_forward.1} parent=12 // pred_region
        // Predicated region
        $region18: #{program_forward.1} parent=16 // pred_check
          _
        $region19: #{program_forward.1} parent=16 // pred_check_branch
          %1508 = sbr.rel (0) target = $region21
        $region20: #{program_forward.1} parent=16 // pred_region
          loop: start=0, step=1, limit=1
          $region22: #{program_forward.1} parent=20 // loop_pre_header
            _
          $region23: #{program_forward.1} parent=20 // loop_header
            %s1510 = sphi 0, %s1514
            %p1511 = scmp.ge.s32.totalorder %s1510, 1
            %s1515 = sphi [#allocation2], [#allocation2]
            %s1516 = sphi %s2, %s2
          $region24: #{program_forward.1} parent=20 // loop_header_branch
            %1513 = sbr.rel (%p1511) target = $region28
          $region25: #{program_forward.1} parent=20 // loop_body
            %v1517 = vld [vmem:[%s1515] sm:$0xff]
            %1518 = vst [vmem:[%s1516] sm:$0xff] %v1517
            %v1519 = vld [vmem:[%s1515 + $0x8] sm:$0xff]
            %1520 = vst [vmem:[%s1516 + $0x8] sm:$0xff] %v1519
            %v1521 = vld [vmem:[%s1515 + $0x10] sm:$0xff]
            %1522 = vst [vmem:[%s1516 + $0x10] sm:$0xff] %v1521
            %v1523 = vld [vmem:[%s1515 + $0x18] sm:$0xff]
            %1524 = vst [vmem:[%s1516 + $0x18] sm:$0xff] %v1523
            %v1525 = vld [vmem:[%s1515 + $0x20] sm:$0xff]
            %1526 = vst [vmem:[%s1516 + $0x20] sm:$0xff] %v1525
            %v1527 = vld [vmem:[%s1515 + $0x28] sm:$0xff]
            %1528 = vst [vmem:[%s1516 + $0x28] sm:$0xff] %v1527
          $region26: #{program_forward.1} parent=20 // loop_footer
            %s1514 = sadd.s32 1, %s1510
          $region27: #{program_forward.1} parent=20 // loop_footer_branch
            %1509 = sbr.rel target = $region23
          $region28: #{program_forward.1} parent=20 // loop_exit
            _
        $region21: #{program_forward.1} parent=16 // pred_fallthru
          _
        // Predicated region
        $region29: #{program_forward.1} parent=16 // pred_check
          _
        $region30: #{program_forward.1} parent=16 // pred_check_branch
          %1530 = sbr.rel target = $region32
        $region31: #{program_forward.1} parent=16 // pred_region
          _
        $region32: #{program_forward.1} parent=16 // pred_fallthru
          _
      $region17: #{program_forward.1} parent=12 // pred_fallthru
        _
      %1531 = vnop
    $region13: #{program_forward.1} parent=1 // pred_fallthru
      _
    // Predicated region
    $region33: #{program_forward.1} parent=1 // pred_check
      _
    $region34: #{program_forward.1} parent=1 // pred_check_branch
      %1533 = sbr.rel (0) target = $region36
    $region35: #{program_forward.1} parent=1 // pred_region
      // Predicated region
      $region37: #{program_forward.1} parent=35 // pred_check
        _
      $region38: #{program_forward.1} parent=35 // pred_check_branch
        %1535 = sbr.rel (0) target = $region40
      $region39: #{program_forward.1} parent=35 // pred_region
        // Predicated region
        $region41: #{program_forward.1} parent=39 // pred_check
          _
        $region42: #{program_forward.1} parent=39 // pred_check_branch
          %1537 = sbr.rel target = $region44
        $region43: #{program_forward.1} parent=39 // pred_region
          // Predicated region
          $region56: #{program_forward.1} parent=43 // pred_check
            _
          $region57: #{program_forward.1} parent=43 // pred_check_branch
            %1552 = sbr.rel (0) target = $region59
          $region58: #{program_forward.1} parent=43 // pred_region
            loop: start=0, step=1, limit=1
            $region60: #{program_forward.1} parent=58 // loop_pre_header
              _
            $region61: #{program_forward.1} parent=58 // loop_header
              %s1555 = sphi 0, %s1559
              %p1556 = scmp.ge.s32.totalorder %s1555, 1
              %s1560 = sphi [#allocation3], [#allocation3]
              %s1561 = sphi %s3, %s3
            $region62: #{program_forward.1} parent=58 // loop_header_branch
              %1558 = sbr.rel (%p1556) target = $region66
            $region63: #{program_forward.1} parent=58 // loop_body
              %v1562 = vld [vmem:[%s1560] sm:$0x3]
              %1563 = vst [vmem:[%s1561] sm:$0x3] %v1562
            $region64: #{program_forward.1} parent=58 // loop_footer
              %s1559 = sadd.s32 1, %s1555
            $region65: #{program_forward.1} parent=58 // loop_footer_branch
              %1554 = sbr.rel target = $region61
            $region66: #{program_forward.1} parent=58 // loop_exit
              _
          $region59: #{program_forward.1} parent=43 // pred_fallthru
            _
        $region44: #{program_forward.1} parent=39 // pred_fallthru
          _
        // Predicated region
        $region45: #{program_forward.1} parent=39 // pred_check
          _
        $region46: #{program_forward.1} parent=39 // pred_check_branch
          %1539 = sbr.rel (0) target = $region48
        $region47: #{program_forward.1} parent=39 // pred_region
          loop: start=0, step=1, limit=1
          $region49: #{program_forward.1} parent=47 // loop_pre_header
            _
          $region50: #{program_forward.1} parent=47 // loop_header
            %s1542 = sphi 0, %s1546
            %p1543 = scmp.ge.s32.totalorder %s1542, 1
            %s1547 = sphi [#allocation3], [#allocation3]
            %s1548 = sphi %s3, %s3
          $region51: #{program_forward.1} parent=47 // loop_header_branch
            %1545 = sbr.rel (%p1543) target = $region55
          $region52: #{program_forward.1} parent=47 // loop_body
            %v1549 = vld [vmem:[%s1547] sm:$0x3]
            %1550 = vst [vmem:[%s1548] sm:$0x3] %v1549
          $region53: #{program_forward.1} parent=47 // loop_footer
            %s1546 = sadd.s32 1, %s1542
          $region54: #{program_forward.1} parent=47 // loop_footer_branch
            %1541 = sbr.rel target = $region50
          $region55: #{program_forward.1} parent=47 // loop_exit
            _
        $region48: #{program_forward.1} parent=39 // pred_fallthru
          _
      $region40: #{program_forward.1} parent=35 // pred_fallthru
        _
      %1564 = vnop
    $region36: #{program_forward.1} parent=1 // pred_fallthru
      _
    // Predicated region
    $region67: #{program_forward.1} parent=1 // pred_check
      _
    $region68: #{program_forward.1} parent=1 // pred_check_branch
      %1566 = sbr.rel (0) target = $region70
    $region69: #{program_forward.1} parent=1 // pred_region
      _
    $region70: #{program_forward.1} parent=1 // pred_fallthru
      _
    // Predicated region
    $region71: #{program_forward.1} parent=1 // pred_check
      _
    $region72: #{program_forward.1} parent=1 // pred_check_branch
      %1568 = sbr.rel (0) target = $region74
    $region73: #{program_forward.1} parent=1 // pred_region
      _
    $region74: #{program_forward.1} parent=1 // pred_fallthru
      _

</llo_original>
